<compile_context>
chip_gen: v6e
topology: v6e:2x2x1
jax: 0.10.0
libtpu: 0.0.40
codegen_flags: <defaults>
</compile_context>

<pallas_src>
import jax
import jax.numpy as jnp
from jax import lax
from jax.experimental import pallas as pl
from jax.experimental.pallas import tpu as pltpu


# ----------------------------- configuration -------------------------------
INPUT_FEATURES = 32
OUTPUT_FEATURES = 16
HIDDEN_FEATURES = 8          # present in the PyTorch __init__ but unused
NUM_ITERATIONS = 2           # number of FixedPointLayer blocks
FP_TOLERANCE = 1e-4
FP_TOL_SQ = FP_TOLERANCE * FP_TOLERANCE
FP_MAX_ITERATIONS = 50
K_UNROLL = 2                                   # updates per convergence check
FP_MAX_BLOCKS = FP_MAX_ITERATIONS // K_UNROLL  # 25 blocks of 2 = 50 iterations
BATCH = 8


# ------------------------------- kernel ------------------------------------
def transformers_kernel(x_ref, wT_ref, b_ref, wfpT_ref, out_ref):
    """Whole forward pass in one kernel (single grid point, full-array blocks).

    x_ref    : (B, IN)          input
    wT_ref   : (IN, OUT)        pre-transposed nn.Linear weight
    b_ref    : (1, OUT)         nn.Linear bias (kept 2-D for TPU layout)
    wfpT_ref : (L, OUT, OUT)    pre-transposed stacked FixedPointLayer weights
    out_ref  : (B, OUT)         output
    """
    x = x_ref[...]

    # z = tanh(linear(x))  -- MXU matmul (no in-kernel transpose) + EUP tanh
    z = jnp.tanh(
        jnp.dot(x, wT_ref[...], preferred_element_type=jnp.float32)
        + b_ref[...]
    )

    # FixedPointLayer blocks (static Python loop over the few layers).
    for layer in range(NUM_ITERATIONS):
        w_t = wfpT_ref[layer]  # (OUT, OUT), already transposed -- load once

        def step(z_fp):
            return jnp.tanh(
                jnp.dot(z_fp, w_t, preferred_element_type=jnp.float32) + z
            )

        # --- block 1 (iterations 1 & 2), first update analytic -------------
        # tanh(0 @ W + z) == tanh(z) exactly.
        z_a0 = jnp.tanh(z)
        z_b0 = step(z_a0)
        d_a0 = -z_a0                       # z_prev(=0) - z_a ; reduced post-loop
        d_b0 = z_a0 - z_b0
        err_b0_sq = jnp.sum(d_b0 * d_b0)   # single reduce for the pair

        # --- remaining blocks: 2 updates per cond-check -------------------
        def cond_fn(carry):
            _, _, _, err_b_sq, blk = carry
            return jnp.logical_and(blk < FP_MAX_BLOCKS, err_b_sq >= FP_TOL_SQ)

        def body_fn(carry):
            _, z_prev, _, _, blk = carry
            z_a = step(z_prev)
            z_b = step(z_a)
            d_a = z_prev - z_a             # kept as a vector (no in-loop reduce)
            d_b = z_a - z_b
            err_b_sq = jnp.sum(d_b * d_b)  # one XLU reduce per 2 iterations
            return z_a, z_b, d_a, err_b_sq, blk + 1

        z_a, z_b, d_a, _, _ = lax.while_loop(
            cond_fn, body_fn,
            (z_a0, z_b0, d_a0, err_b0_sq, jnp.int32(1)),
        )

        # Recover the exact PyTorch stopping point: if the *first* update of
        # the final pair already met tolerance, PyTorch would have returned it.
        err_a_sq = jnp.sum(d_a * d_a)      # single post-loop reduce per layer
        z = jnp.where(err_a_sq < FP_TOL_SQ, z_a, z_b)

    out_ref[...] = z.astype(out_ref.dtype)


# ------------------------------- wrapper ------------------------------------
def prepare_params(w_lin, b_lin, w_fp):
    """One-time (init-time) parameter prep: pre-transpose weights so the
    kernel does plain x @ W (no in-kernel XLU transpose) and the per-call
    graph is just the pallas_call."""
    w_lin_t = jnp.transpose(w_lin)            # (IN, OUT)
    b_lin_2d = b_lin.reshape(1, -1)           # (1, OUT)
    w_fp_t = jnp.transpose(w_fp, (0, 2, 1))   # (L, OUT, OUT)
    return w_lin_t, b_lin_2d, w_fp_t


@jax.jit
def transformers_forward(x, w_lin_t, b_lin_2d, w_fp_t):
    B = x.shape[0]
    OUT = w_lin_t.shape[1]
    return pl.pallas_call(
        transformers_kernel,
        out_shape=jax.ShapeDtypeStruct((B, OUT), jnp.float32),
        in_specs=[
            pl.BlockSpec(memory_space=pltpu.VMEM),
            pl.BlockSpec(memory_space=pltpu.VMEM),
            pl.BlockSpec(memory_space=pltpu.VMEM),
            pl.BlockSpec(memory_space=pltpu.VMEM),
        ],
        out_specs=pl.BlockSpec(memory_space=pltpu.VMEM),
    )(x, w_lin_t, b_lin_2d, w_fp_t)


# -------------------------- pure-JAX reference ------------------------------
def reference_forward(x, w_lin, b_lin, w_fp):
    # Faithful to the PyTorch module: per-iteration early exit.
    z = jnp.tanh(x @ w_lin.T + b_lin.reshape(-1))
    for layer in range(NUM_ITERATIONS):
        w_i = w_fp[layer]
        z_fp = jnp.zeros_like(z)
        it = 0
        while it < FP_MAX_ITERATIONS:
            z_next = jnp.tanh(z_fp @ w_i.T + z)
            err_sq = float(jnp.sum((z_fp - z_next) ** 2))
            z_fp = z_next
            it += 1
            if err_sq < FP_TOL_SQ:   # identical to ||z - z_next|| < tol
                break
        z = z_fp
    return z


# --------------------------------- main --------------------------------------
if __name__ == "__main__":
    key = jax.random.PRNGKey(0)
    k_x, k_w, k_b, k_fp = jax.random.split(key, 4)

    x = jax.random.normal(k_x, (BATCH, INPUT_FEATURES), dtype=jnp.float32)

    bound_lin = 1.0 / jnp.sqrt(jnp.float32(INPUT_FEATURES))
    w_lin = jax.random.uniform(k_w, (OUTPUT_FEATURES, INPUT_FEATURES),
                               minval=-bound_lin, maxval=bound_lin,
                               dtype=jnp.float32)
    b_lin = jax.random.uniform(k_b, (OUTPUT_FEATURES,),
                               minval=-bound_lin, maxval=bound_lin,
                               dtype=jnp.float32)

    # Fixed-point weights scaled down so the tanh iteration contracts.
    w_fp = 0.1 * jax.random.normal(
        k_fp, (NUM_ITERATIONS, OUTPUT_FEATURES, OUTPUT_FEATURES),
        dtype=jnp.float32)

    # One-time parameter prep (would live at model init in a real setup).
    w_lin_t, b_lin_2d, w_fp_t = prepare_params(w_lin, b_lin, w_fp)

    out = transformers_forward(x, w_lin_t, b_lin_2d, w_fp_t)
    out = jax.block_until_ready(out)

    ref = reference_forward(x, w_lin, b_lin, w_fp)
    assert out.shape == (BATCH, OUTPUT_FEATURES)
    assert jnp.allclose(out, ref, atol=1e-5, rtol=1e-5), "mismatch vs reference"

    print("KERNEL_OK")
</pallas_src>

<mosaic_0001>
module attributes {stable_mosaic.version = 11 : i64} {
  func.func @transformers_kernel(%arg0: memref<8x32xf32, #tpu.memory_space<vmem>>, %arg1: memref<32x16xf32, #tpu.memory_space<vmem>>, %arg2: memref<1x16xf32, #tpu.memory_space<vmem>>, %arg3: memref<2x16x16xf32, #tpu.memory_space<vmem>>, %arg4: memref<8x16xf32, #tpu.memory_space<vmem>>) attributes {dimension_semantics = [], scalar_prefetch = 0 : i64, scratch_operands = 0 : i64, tpu.core_type = #tpu.core_type<tc>} {
    %c0 = arith.constant 0 : index
    %c0_0 = arith.constant 0 : index
    %0 = vector.load %arg0[%c0, %c0_0] : memref<8x32xf32, #tpu.memory_space<vmem>>, vector<8x32xf32>
    %c0_1 = arith.constant 0 : index
    %c0_2 = arith.constant 0 : index
    %1 = vector.load %arg1[%c0_1, %c0_2] : memref<32x16xf32, #tpu.memory_space<vmem>>, vector<32x16xf32>
    %cst = arith.constant dense<0.000000e+00> : vector<8x16xf32>
    %2 = tpu.matmul %0, %1, %cst {dimension_numbers = #tpu.dot_dimension_numbers<[1], [0], [0], [1], [0, 0, 1, 1], [], []>} : vector<8x32xf32>, vector<32x16xf32>, vector<8x16xf32> -> vector<8x16xf32>
    %c0_3 = arith.constant 0 : index
    %c0_4 = arith.constant 0 : index
    %3 = vector.load %arg2[%c0_3, %c0_4] : memref<1x16xf32, #tpu.memory_space<vmem>>, vector<1x16xf32>
    %4 = vector.broadcast %3 : vector<1x16xf32> to vector<8x16xf32>
    %5 = arith.addf %2, %4 : vector<8x16xf32>
    %6 = math.tanh %5 : vector<8x16xf32>
    %c0_5 = arith.constant 0 : index
    %c0_6 = arith.constant 0 : index
    %c0_7 = arith.constant 0 : index
    %7 = vector.load %arg3[%c0_5, %c0_6, %c0_7] : memref<2x16x16xf32, #tpu.memory_space<vmem>>, vector<1x16x16xf32>
    %8 = vector.shape_cast %7 : vector<1x16x16xf32> to vector<16x16xf32>
    %9 = math.tanh %6 : vector<8x16xf32>
    %cst_8 = arith.constant dense<0.000000e+00> : vector<8x16xf32>
    %10 = tpu.matmul %9, %8, %cst_8 {dimension_numbers = #tpu.dot_dimension_numbers<[1], [0], [0], [1], [0, 0, 1, 1], [], []>} : vector<8x16xf32>, vector<16x16xf32>, vector<8x16xf32> -> vector<8x16xf32>
    %11 = arith.addf %10, %6 : vector<8x16xf32>
    %12 = math.tanh %11 : vector<8x16xf32>
    %cst_9 = arith.constant 0.000000e+00 : f32
    %13 = vector.broadcast %cst_9 : f32 to vector<8x16xf32>
    %14 = arith.subf %13, %9 : vector<8x16xf32>
    %15 = arith.subf %9, %12 : vector<8x16xf32>
    %16 = arith.mulf %15, %15 : vector<8x16xf32>
    %17 = vector.shape_cast %16 : vector<8x16xf32> to vector<1x8x16xf32>
    %cst_10 = arith.constant dense<0.000000e+00> : vector<1xf32>
    %18 = vector.multi_reduction <add>, %17, %cst_10 [1, 2] : vector<1x8x16xf32> to vector<1xf32>
    %19 = vector.shape_cast %18 : vector<1xf32> to vector<1x1x1xf32>
    %20 = vector.extract %19[0, 0, 0] : f32 from vector<1x1x1xf32>
    %c1_i32 = arith.constant 1 : i32
    %21:5 = scf.while (%arg5 = %9, %arg6 = %12, %arg7 = %14, %arg8 = %20, %arg9 = %c1_i32) : (vector<8x16xf32>, vector<8x16xf32>, vector<8x16xf32>, f32, i32) -> (vector<8x16xf32>, vector<8x16xf32>, vector<8x16xf32>, f32, i32) {
      %c25_i32 = arith.constant 25 : i32
      %52 = arith.cmpi slt, %arg9, %c25_i32 : i32
      %cst_23 = arith.constant 9.99999993E-9 : f32
      %53 = arith.cmpf oge, %arg8, %cst_23 : f32
      %54 = arith.andi %52, %53 : i1
      scf.condition(%54) %arg5, %arg6, %arg7, %arg8, %arg9 : vector<8x16xf32>, vector<8x16xf32>, vector<8x16xf32>, f32, i32
    } do {
    ^bb0(%arg5: vector<8x16xf32>, %arg6: vector<8x16xf32>, %arg7: vector<8x16xf32>, %arg8: f32, %arg9: i32):
      %cst_23 = arith.constant dense<0.000000e+00> : vector<8x16xf32>
      %52 = tpu.matmul %arg6, %8, %cst_23 {dimension_numbers = #tpu.dot_dimension_numbers<[1], [0], [0], [1], [0, 0, 1, 1], [], []>} : vector<8x16xf32>, vector<16x16xf32>, vector<8x16xf32> -> vector<8x16xf32>
      %53 = arith.addf %52, %6 : vector<8x16xf32>
      %54 = math.tanh %53 : vector<8x16xf32>
      %cst_24 = arith.constant dense<0.000000e+00> : vector<8x16xf32>
      %55 = tpu.matmul %54, %8, %cst_24 {dimension_numbers = #tpu.dot_dimension_numbers<[1], [0], [0], [1], [0, 0, 1, 1], [], []>} : vector<8x16xf32>, vector<16x16xf32>, vector<8x16xf32> -> vector<8x16xf32>
      %56 = arith.addf %55, %6 : vector<8x16xf32>
      %57 = math.tanh %56 : vector<8x16xf32>
      %58 = arith.subf %arg6, %54 : vector<8x16xf32>
      %59 = arith.subf %54, %57 : vector<8x16xf32>
      %60 = arith.mulf %59, %59 : vector<8x16xf32>
      %61 = vector.shape_cast %60 : vector<8x16xf32> to vector<1x8x16xf32>
      %cst_25 = arith.constant dense<0.000000e+00> : vector<1xf32>
      %62 = vector.multi_reduction <add>, %61, %cst_25 [1, 2] : vector<1x8x16xf32> to vector<1xf32>
      %63 = vector.shape_cast %62 : vector<1xf32> to vector<1x1x1xf32>
      %64 = vector.extract %63[0, 0, 0] : f32 from vector<1x1x1xf32>
      %c1_i32_26 = arith.constant 1 : i32
      %65 = arith.addi %arg9, %c1_i32_26 : i32
      scf.yield %54, %57, %58, %64, %65 : vector<8x16xf32>, vector<8x16xf32>, vector<8x16xf32>, f32, i32
    }
    %22 = arith.mulf %21#2, %21#2 : vector<8x16xf32>
    %23 = vector.shape_cast %22 : vector<8x16xf32> to vector<1x8x16xf32>
    %cst_11 = arith.constant dense<0.000000e+00> : vector<1xf32>
    %24 = vector.multi_reduction <add>, %23, %cst_11 [1, 2] : vector<1x8x16xf32> to vector<1xf32>
    %25 = vector.shape_cast %24 : vector<1xf32> to vector<1x1x1xf32>
    %26 = vector.extract %25[0, 0, 0] : f32 from vector<1x1x1xf32>
    %cst_12 = arith.constant 9.99999993E-9 : f32
    %27 = arith.cmpf olt, %26, %cst_12 : f32
    %28 = arith.select %27, %21#0, %21#1 : vector<8x16xf32>
    %c1 = arith.constant 1 : index
    %c0_13 = arith.constant 0 : index
    %c0_14 = arith.constant 0 : index
    %29 = vector.load %arg3[%c1, %c0_13, %c0_14] : memref<2x16x16xf32, #tpu.memory_space<vmem>>, vector<1x16x16xf32>
    %30 = vector.shape_cast %29 : vector<1x16x16xf32> to vector<16x16xf32>
    %31 = math.tanh %28 : vector<8x16xf32>
    %cst_15 = arith.constant dense<0.000000e+00> : vector<8x16xf32>
    %32 = tpu.matmul %31, %30, %cst_15 {dimension_numbers = #tpu.dot_dimension_numbers<[1], [0], [0], [1], [0, 0, 1, 1], [], []>} : vector<8x16xf32>, vector<16x16xf32>, vector<8x16xf32> -> vector<8x16xf32>
    %33 = arith.addf %32, %28 : vector<8x16xf32>
    %34 = math.tanh %33 : vector<8x16xf32>
    %cst_16 = arith.constant 0.000000e+00 : f32
    %35 = vector.broadcast %cst_16 : f32 to vector<8x16xf32>
    %36 = arith.subf %35, %31 : vector<8x16xf32>
    %37 = arith.subf %31, %34 : vector<8x16xf32>
    %38 = arith.mulf %37, %37 : vector<8x16xf32>
    %39 = vector.shape_cast %38 : vector<8x16xf32> to vector<1x8x16xf32>
    %cst_17 = arith.constant dense<0.000000e+00> : vector<1xf32>
    %40 = vector.multi_reduction <add>, %39, %cst_17 [1, 2] : vector<1x8x16xf32> to vector<1xf32>
    %41 = vector.shape_cast %40 : vector<1xf32> to vector<1x1x1xf32>
    %42 = vector.extract %41[0, 0, 0] : f32 from vector<1x1x1xf32>
    %c1_i32_18 = arith.constant 1 : i32
    %43:5 = scf.while (%arg5 = %31, %arg6 = %34, %arg7 = %36, %arg8 = %42, %arg9 = %c1_i32_18) : (vector<8x16xf32>, vector<8x16xf32>, vector<8x16xf32>, f32, i32) -> (vector<8x16xf32>, vector<8x16xf32>, vector<8x16xf32>, f32, i32) {
      %c25_i32 = arith.constant 25 : i32
      %52 = arith.cmpi slt, %arg9, %c25_i32 : i32
      %cst_23 = arith.constant 9.99999993E-9 : f32
      %53 = arith.cmpf oge, %arg8, %cst_23 : f32
      %54 = arith.andi %52, %53 : i1
      scf.condition(%54) %arg5, %arg6, %arg7, %arg8, %arg9 : vector<8x16xf32>, vector<8x16xf32>, vector<8x16xf32>, f32, i32
    } do {
    ^bb0(%arg5: vector<8x16xf32>, %arg6: vector<8x16xf32>, %arg7: vector<8x16xf32>, %arg8: f32, %arg9: i32):
      %cst_23 = arith.constant dense<0.000000e+00> : vector<8x16xf32>
      %52 = tpu.matmul %arg6, %30, %cst_23 {dimension_numbers = #tpu.dot_dimension_numbers<[1], [0], [0], [1], [0, 0, 1, 1], [], []>} : vector<8x16xf32>, vector<16x16xf32>, vector<8x16xf32> -> vector<8x16xf32>
      %53 = arith.addf %52, %28 : vector<8x16xf32>
      %54 = math.tanh %53 : vector<8x16xf32>
      %cst_24 = arith.constant dense<0.000000e+00> : vector<8x16xf32>
      %55 = tpu.matmul %54, %30, %cst_24 {dimension_numbers = #tpu.dot_dimension_numbers<[1], [0], [0], [1], [0, 0, 1, 1], [], []>} : vector<8x16xf32>, vector<16x16xf32>, vector<8x16xf32> -> vector<8x16xf32>
      %56 = arith.addf %55, %28 : vector<8x16xf32>
      %57 = math.tanh %56 : vector<8x16xf32>
      %58 = arith.subf %arg6, %54 : vector<8x16xf32>
      %59 = arith.subf %54, %57 : vector<8x16xf32>
      %60 = arith.mulf %59, %59 : vector<8x16xf32>
      %61 = vector.shape_cast %60 : vector<8x16xf32> to vector<1x8x16xf32>
      %cst_25 = arith.constant dense<0.000000e+00> : vector<1xf32>
      %62 = vector.multi_reduction <add>, %61, %cst_25 [1, 2] : vector<1x8x16xf32> to vector<1xf32>
      %63 = vector.shape_cast %62 : vector<1xf32> to vector<1x1x1xf32>
      %64 = vector.extract %63[0, 0, 0] : f32 from vector<1x1x1xf32>
      %c1_i32_26 = arith.constant 1 : i32
      %65 = arith.addi %arg9, %c1_i32_26 : i32
      scf.yield %54, %57, %58, %64, %65 : vector<8x16xf32>, vector<8x16xf32>, vector<8x16xf32>, f32, i32
    }
    %44 = arith.mulf %43#2, %43#2 : vector<8x16xf32>
    %45 = vector.shape_cast %44 : vector<8x16xf32> to vector<1x8x16xf32>
    %cst_19 = arith.constant dense<0.000000e+00> : vector<1xf32>
    %46 = vector.multi_reduction <add>, %45, %cst_19 [1, 2] : vector<1x8x16xf32> to vector<1xf32>
    %47 = vector.shape_cast %46 : vector<1xf32> to vector<1x1x1xf32>
    %48 = vector.extract %47[0, 0, 0] : f32 from vector<1x1x1xf32>
    %cst_20 = arith.constant 9.99999993E-9 : f32
    %49 = arith.cmpf olt, %48, %cst_20 : f32
    %50 = arith.select %49, %43#0, %43#1 : vector<8x16xf32>
    %c0_21 = arith.constant 0 : index
    %c0_22 = arith.constant 0 : index
    %51 = vector.load %arg4[%c0_21, %c0_22] : memref<8x16xf32, #tpu.memory_space<vmem>>, vector<8x16xf32>
    tpu.vector_store %arg4[%c0_21, %c0_22], %50 {strides = array<i32>} : memref<8x16xf32, #tpu.memory_space<vmem>>, vector<8x16xf32>,
    return
  }
}

</mosaic_0001>

<llo_original>
// kernel: transformers_forward.1
$region0: #{transformers_forward.1}
  #allocation0 [shape = 'u32[]', space=smem, size = 0x4, offset = 0x4, fixed_abs, tag = 'smem constant byte address 0x4 - core index']
  #allocation1 [shape = 'u32[144,128]{1,0:T(1,128)}', space=vmem, size = 0x12000, scoped, tag = 'internal scratch']
  %s0 = inlined_call_operand.vmem [shape: f32[8,32], index: 0, kind: input, shape index: {}]
  %s1 = inlined_call_operand.vmem [shape: f32[32,16], index: 1, kind: input, shape index: {}]
  %s2 = inlined_call_operand.vmem [shape: f32[1,16], index: 2, kind: input, shape index: {}]
  %s3 = inlined_call_operand.vmem [shape: f32[2,16,16], index: 3, kind: input, shape index: {}]
  %s4 = inlined_call_operand.hbm [shape: f32[8,16], index: 4, kind: output, shape index: {}]
  %s5 = sld [smem:[#allocation0]]
  $region40: #{transformers_forward.1} parent=0
    _
  %s7 = ssub.s32 1, %s5
  %s8 = scalar_select 0, %s7, %s5
  $region1: #{transformers_forward.1} parent=0
    #allocation2 [shape = 'u8[4096]{0}', space=vmem, size = 0x1000, scoped, tag = 'output window, operand 0, single buffered']
    #allocation3 [shape = 's32[1]{0}', space=sflag, size = 0x4, scoped, tag = 'scoped memory for transformers_forward.1']
    %9 = vsyncpa [#allocation3], 0
    // Predicated region
    $region2: #{transformers_forward.1} parent=1 // pred_check
      _
    $region3: #{transformers_forward.1} parent=1 // pred_check_branch
      %11 = sbr.rel (0) target = $region5
    $region4: #{transformers_forward.1} parent=1 // pred_region
      _
    $region5: #{transformers_forward.1} parent=1 // pred_fallthru
      _
    // Predicated region
    $region6: #{transformers_forward.1} parent=1 // pred_check
      _
    $region7: #{transformers_forward.1} parent=1 // pred_check_branch
      %13 = sbr.rel (0) target = $region9
    $region8: #{transformers_forward.1} parent=1 // pred_region
      _
    $region9: #{transformers_forward.1} parent=1 // pred_fallthru
      _
    // Predicated region
    $region10: #{transformers_forward.1} parent=1 // pred_check
      _
    $region11: #{transformers_forward.1} parent=1 // pred_check_branch
      %15 = sbr.rel (0) target = $region13
    $region12: #{transformers_forward.1} parent=1 // pred_region
      _
    $region13: #{transformers_forward.1} parent=1 // pred_fallthru
      _
    // Predicated region
    $region14: #{transformers_forward.1} parent=1 // pred_check
      _
    $region15: #{transformers_forward.1} parent=1 // pred_check_branch
      %17 = sbr.rel (0) target = $region17
    $region16: #{transformers_forward.1} parent=1 // pred_region
      _
    $region17: #{transformers_forward.1} parent=1 // pred_fallthru
      _
    %v18 = vld [vmem:[%s0] sm:$0xff]
    %v19 = vld [vmem:[%s1] sm:$0xff]
    %v20 = vld [vmem:[%s1 + $0x8] sm:$0xff]
    %v21 = vld [vmem:[%s1 + $0x10] sm:$0xff]
    %v22 = vld [vmem:[%s1 + $0x18] sm:$0xff]
    %v23 = vld [vmem:[%s2] sm:$0x1]
    %v25 = vlaneseq
    %v26 = vshrl.u32 %v25, 7
    %v27 = vsub.s32 0, %v26
    %v28 = vrot.slane %v23, %v27
    %vm30 = vcmask 261120
    %v32 = vsel %vm30, %v18, 0
    %34 = vmatprep.subr.mxu0 0.0
    %35 = vmatpush1.msra.mxu0 0.0
    %36 = vmatprep.subr.mxu0 0.0
    %37 = vmatpush1.msra.mxu0 0.0
    %38 = vmatprep.subr.mxu0 0.0
    %39 = vmatpush1.msra.mxu0 0.0
    %40 = vmatprep.subr.mxu0 0.0
    %41 = vmatpush1.msra.mxu0 0.0
    %42 = vmatprep.subr.mxu0 0.0
    %43 = vmatpush1.msra.mxu0 0.0
    %44 = vmatprep.subr.mxu0 0.0
    %45 = vmatpush1.msra.mxu0 0.0
    %46 = vmatprep.subr.mxu0 0.0
    %47 = vmatpush1.msra.mxu0 0.0
    %48 = vmatprep.subr.mxu0 0.0
    %49 = vmatpush1.msra.mxu0 0.0
    %50 = vmatprep.subr.mxu0 0.0
    %51 = vmatpush1.msra.mxu0 0.0
    %52 = vmatprep.subr.mxu0 0.0
    %53 = vmatpush1.msra.mxu0 0.0
    %54 = vmatprep.subr.mxu0 0.0
    %55 = vmatpush1.msra.mxu0 0.0
    %56 = vmatprep.subr.mxu0 0.0
    %57 = vmatpush1.msra.mxu0 0.0
    %58 = vmatprep.subr.mxu0 0.0
    %59 = vmatpush1.msra.mxu0 %v22
    %60 = vmatprep.subr.mxu0 0.0
    %61 = vmatpush1.msra.mxu0 %v21
    %62 = vmatprep.subr.mxu0 0.0
    %63 = vmatpush1.msra.mxu0 %v20
    %64 = vmatprep.subr.mxu0 0.0
    %65 = vmatpush1.msra.mxu0 %v19
    %66 = vmatprep.subr.mxu0 0.0
    %67 = vmatpush2.msra.mxu0 0.0
    %68 = vmatprep.subr.mxu0 0.0
    %69 = vmatpush2.msra.mxu0 0.0
    %70 = vmatprep.subr.mxu0 0.0
    %71 = vmatpush2.msra.mxu0 0.0
    %72 = vmatprep.subr.mxu0 0.0
    %73 = vmatpush2.msra.mxu0 0.0
    %74 = vmatprep.subr.mxu0 0.0
    %75 = vmatpush2.msra.mxu0 0.0
    %76 = vmatprep.subr.mxu0 0.0
    %77 = vmatpush2.msra.mxu0 0.0
    %78 = vmatprep.subr.mxu0 0.0
    %79 = vmatpush2.msra.mxu0 0.0
    %80 = vmatprep.subr.mxu0 0.0
    %81 = vmatpush2.msra.mxu0 0.0
    %82 = vmatprep.subr.mxu0 0.0
    %83 = vmatpush2.msra.mxu0 0.0
    %84 = vmatprep.subr.mxu0 0.0
    %85 = vmatpush2.msra.mxu0 0.0
    %86 = vmatprep.subr.mxu0 0.0
    %87 = vmatpush2.msra.mxu0 0.0
    %88 = vmatprep.subr.mxu0 0.0
    %89 = vmatpush2.msra.mxu0 0.0
    %90 = vmatprep.subr.mxu0 0.0
    %91 = vmatpush2.msra.mxu0 0.0
    %92 = vmatprep.subr.mxu0 0.0
    %93 = vmatpush2.msra.mxu0 0.0
    %94 = vmatprep.subr.mxu0 0.0
    %95 = vmatpush2.msra.mxu0 0.0
    %96 = vmatprep.subr.mxu0 0.0
    %97 = vmatpush2.msra.mxu0 0.0
    %98 = vmatprep.mubr.f32.mxu0 0.0
    %99 = vmatmul.mubr.f32.gmra.mxu0 %v32
    %v100 = vpop.f32.mrf.mxu0
    %v101 = vadd.f32 %v28, %v100
    %v102 = vpop.f32.mrf.mxu0
    %103 = vdwg.mxu0
    %v104 = vtanh.pop %v101
    %v105 = vld [vmem:[%s3] sm:$0xff]
    %v106 = vld [vmem:[%s3 + $0x8] sm:$0xff]
    %v107 = vtanh.pop %v104
    %vm108 = vcmask 130048
    %v110 = vsel %vm108, %v107, 0
    %112 = vmatprep.subr.mxu0 0.0
    %113 = vmatpush1.msra.mxu0 0.0
    %114 = vmatprep.subr.mxu0 0.0
    %115 = vmatpush1.msra.mxu0 0.0
    %116 = vmatprep.subr.mxu0 0.0
    %117 = vmatpush1.msra.mxu0 0.0
    %118 = vmatprep.subr.mxu0 0.0
    %119 = vmatpush1.msra.mxu0 0.0
    %120 = vmatprep.subr.mxu0 0.0
    %121 = vmatpush1.msra.mxu0 0.0
    %122 = vmatprep.subr.mxu0 0.0
    %123 = vmatpush1.msra.mxu0 0.0
    %124 = vmatprep.subr.mxu0 0.0
    %125 = vmatpush1.msra.mxu0 0.0
    %126 = vmatprep.subr.mxu0 0.0
    %127 = vmatpush1.msra.mxu0 0.0
    %128 = vmatprep.subr.mxu0 0.0
    %129 = vmatpush1.msra.mxu0 0.0
    %130 = vmatprep.subr.mxu0 0.0
    %131 = vmatpush1.msra.mxu0 0.0
    %132 = vmatprep.subr.mxu0 0.0
    %133 = vmatpush1.msra.mxu0 0.0
    %134 = vmatprep.subr.mxu0 0.0
    %135 = vmatpush1.msra.mxu0 0.0
    %136 = vmatprep.subr.mxu0 0.0
    %137 = vmatpush1.msra.mxu0 0.0
    %138 = vmatprep.subr.mxu0 0.0
    %139 = vmatpush1.msra.mxu0 0.0
    %140 = vmatprep.subr.mxu0 0.0
    %141 = vmatpush1.msra.mxu0 %v106
    %142 = vmatprep.subr.mxu0 0.0
    %143 = vmatpush1.msra.mxu0 %v105
    %144 = vmatprep.subr.mxu0 0.0
    %145 = vmatpush2.msra.mxu0 0.0
    %146 = vmatprep.subr.mxu0 0.0
    %147 = vmatpush2.msra.mxu0 0.0
    %148 = vmatprep.subr.mxu0 0.0
    %149 = vmatpush2.msra.mxu0 0.0
    %150 = vmatprep.subr.mxu0 0.0
    %151 = vmatpush2.msra.mxu0 0.0
    %152 = vmatprep.subr.mxu0 0.0
    %153 = vmatpush2.msra.mxu0 0.0
    %154 = vmatprep.subr.mxu0 0.0
    %155 = vmatpush2.msra.mxu0 0.0
    %156 = vmatprep.subr.mxu0 0.0
    %157 = vmatpush2.msra.mxu0 0.0
    %158 = vmatprep.subr.mxu0 0.0
    %159 = vmatpush2.msra.mxu0 0.0
    %160 = vmatprep.subr.mxu0 0.0
    %161 = vmatpush2.msra.mxu0 0.0
    %162 = vmatprep.subr.mxu0 0.0
    %163 = vmatpush2.msra.mxu0 0.0
    %164 = vmatprep.subr.mxu0 0.0
    %165 = vmatpush2.msra.mxu0 0.0
    %166 = vmatprep.subr.mxu0 0.0
    %167 = vmatpush2.msra.mxu0 0.0
    %168 = vmatprep.subr.mxu0 0.0
    %169 = vmatpush2.msra.mxu0 0.0
    %170 = vmatprep.subr.mxu0 0.0
    %171 = vmatpush2.msra.mxu0 0.0
    %172 = vmatprep.subr.mxu0 0.0
    %173 = vmatpush2.msra.mxu0 0.0
    %174 = vmatprep.subr.mxu0 0.0
    %175 = vmatpush2.msra.mxu0 0.0
    %176 = vmatprep.mubr.f32.mxu0 0.0
    %177 = vmatmul.mubr.f32.gmra.mxu0 %v110
    %v178 = vpop.f32.mrf.mxu0
    %v179 = vadd.f32 %v104, %v178
    %v180 = vpop.f32.mrf.mxu0
    %181 = vdwg.mxu0
    %v182 = vtanh.pop %v179
    %v183 = vsub.f32 0.0, %v107
    %v184 = vsub.f32 %v107, %v182
    %v185 = vmul.f32 %v184, %v184
    %v186 = vsel %vm108, %v185, 0.0
    %187 = vadd.xlane.f32.xlu0 %v186
    %v188 = vpop.xlane.xlu0 %187
    %v189 = vrot.slane %v188, 4
    %v190 = vadd.f32 %v188, %v189
    %v191 = vrot.slane %v190, 2
    %v192 = vadd.f32 %v190, %v191
    %v193 = vrot.slane %v192, 1
    %v194 = vadd.f32 %v192, %v193
    %s195 = vtos %v194
    // While loop
    $region18: #{transformers_forward.1} parent=1 // loop_pre_header
      _
    $region19: #{transformers_forward.1} parent=1 // loop_header
      %v197 = vphi %v107, %v281
      %v198 = vphi %v182, %v355
      %v199 = vphi %v183, %v356
      %s200 = sphi %s195, %s368
      %s201 = sphi 1, %s369
      %p202 = scmp.lt.s32.totalorder %s201, 25
      %p203 = scmp.ge.f32.partialorder %s200, 1e-08
      %p204 = pnand %p202, %p203
      %p205 = pneg %p204
    $region20: #{transformers_forward.1} parent=1 // loop_header_branch
      %207 = sbr.rel (%p204) target = $region24
    $region21: #{transformers_forward.1} parent=1 // loop_body
      %v209 = vsel %vm108, %v198, 0
      %211 = vmatprep.subr.mxu0 0.0
      %212 = vmatpush1.msra.mxu0 0.0
      %213 = vmatprep.subr.mxu0 0.0
      %214 = vmatpush1.msra.mxu0 0.0
      %215 = vmatprep.subr.mxu0 0.0
      %216 = vmatpush1.msra.mxu0 0.0
      %217 = vmatprep.subr.mxu0 0.0
      %218 = vmatpush1.msra.mxu0 0.0
      %219 = vmatprep.subr.mxu0 0.0
      %220 = vmatpush1.msra.mxu0 0.0
      %221 = vmatprep.subr.mxu0 0.0
      %222 = vmatpush1.msra.mxu0 0.0
      %223 = vmatprep.subr.mxu0 0.0
      %224 = vmatpush1.msra.mxu0 0.0
      %225 = vmatprep.subr.mxu0 0.0
      %226 = vmatpush1.msra.mxu0 0.0
      %227 = vmatprep.subr.mxu0 0.0
      %228 = vmatpush1.msra.mxu0 0.0
      %229 = vmatprep.subr.mxu0 0.0
      %230 = vmatpush1.msra.mxu0 0.0
      %231 = vmatprep.subr.mxu0 0.0
      %232 = vmatpush1.msra.mxu0 0.0
      %233 = vmatprep.subr.mxu0 0.0
      %234 = vmatpush1.msra.mxu0 0.0
      %235 = vmatprep.subr.mxu0 0.0
      %236 = vmatpush1.msra.mxu0 0.0
      %237 = vmatprep.subr.mxu0 0.0
      %238 = vmatpush1.msra.mxu0 0.0
      %239 = vmatprep.subr.mxu0 0.0
      %240 = vmatpush1.msra.mxu0 %v106
      %241 = vmatprep.subr.mxu0 0.0
      %242 = vmatpush1.msra.mxu0 %v105
      %243 = vmatprep.subr.mxu0 0.0
      %244 = vmatpush2.msra.mxu0 0.0
      %245 = vmatprep.subr.mxu0 0.0
      %246 = vmatpush2.msra.mxu0 0.0
      %247 = vmatprep.subr.mxu0 0.0
      %248 = vmatpush2.msra.mxu0 0.0
      %249 = vmatprep.subr.mxu0 0.0
      %250 = vmatpush2.msra.mxu0 0.0
      %251 = vmatprep.subr.mxu0 0.0
      %252 = vmatpush2.msra.mxu0 0.0
      %253 = vmatprep.subr.mxu0 0.0
      %254 = vmatpush2.msra.mxu0 0.0
      %255 = vmatprep.subr.mxu0 0.0
      %256 = vmatpush2.msra.mxu0 0.0
      %257 = vmatprep.subr.mxu0 0.0
      %258 = vmatpush2.msra.mxu0 0.0
      %259 = vmatprep.subr.mxu0 0.0
      %260 = vmatpush2.msra.mxu0 0.0
      %261 = vmatprep.subr.mxu0 0.0
      %262 = vmatpush2.msra.mxu0 0.0
      %263 = vmatprep.subr.mxu0 0.0
      %264 = vmatpush2.msra.mxu0 0.0
      %265 = vmatprep.subr.mxu0 0.0
      %266 = vmatpush2.msra.mxu0 0.0
      %267 = vmatprep.subr.mxu0 0.0
      %268 = vmatpush2.msra.mxu0 0.0
      %269 = vmatprep.subr.mxu0 0.0
      %270 = vmatpush2.msra.mxu0 0.0
      %271 = vmatprep.subr.mxu0 0.0
      %272 = vmatpush2.msra.mxu0 0.0
      %273 = vmatprep.subr.mxu0 0.0
      %274 = vmatpush2.msra.mxu0 0.0
      %275 = vmatprep.mubr.f32.mxu0 0.0
      %276 = vmatmul.mubr.f32.gmra.mxu0 %v209
      %v277 = vpop.f32.mrf.mxu0
      %v278 = vadd.f32 %v104, %v277
      %v279 = vpop.f32.mrf.mxu0
      %280 = vdwg.mxu0
      %v281 = vtanh.pop %v278
      %v283 = vsel %vm108, %v281, 0
      %285 = vmatprep.subr.mxu0 0.0
      %286 = vmatpush1.msra.mxu0 0.0
      %287 = vmatprep.subr.mxu0 0.0
      %288 = vmatpush1.msra.mxu0 0.0
      %289 = vmatprep.subr.mxu0 0.0
      %290 = vmatpush1.msra.mxu0 0.0
      %291 = vmatprep.subr.mxu0 0.0
      %292 = vmatpush1.msra.mxu0 0.0
      %293 = vmatprep.subr.mxu0 0.0
      %294 = vmatpush1.msra.mxu0 0.0
      %295 = vmatprep.subr.mxu0 0.0
      %296 = vmatpush1.msra.mxu0 0.0
      %297 = vmatprep.subr.mxu0 0.0
      %298 = vmatpush1.msra.mxu0 0.0
      %299 = vmatprep.subr.mxu0 0.0
      %300 = vmatpush1.msra.mxu0 0.0
      %301 = vmatprep.subr.mxu0 0.0
      %302 = vmatpush1.msra.mxu0 0.0
      %303 = vmatprep.subr.mxu0 0.0
      %304 = vmatpush1.msra.mxu0 0.0
      %305 = vmatprep.subr.mxu0 0.0
      %306 = vmatpush1.msra.mxu0 0.0
      %307 = vmatprep.subr.mxu0 0.0
      %308 = vmatpush1.msra.mxu0 0.0
      %309 = vmatprep.subr.mxu0 0.0
      %310 = vmatpush1.msra.mxu0 0.0
      %311 = vmatprep.subr.mxu0 0.0
      %312 = vmatpush1.msra.mxu0 0.0
      %313 = vmatprep.subr.mxu0 0.0
      %314 = vmatpush1.msra.mxu0 %v106
      %315 = vmatprep.subr.mxu0 0.0
      %316 = vmatpush1.msra.mxu0 %v105
      %317 = vmatprep.subr.mxu0 0.0
      %318 = vmatpush2.msra.mxu0 0.0
      %319 = vmatprep.subr.mxu0 0.0
      %320 = vmatpush2.msra.mxu0 0.0
      %321 = vmatprep.subr.mxu0 0.0
      %322 = vmatpush2.msra.mxu0 0.0
      %323 = vmatprep.subr.mxu0 0.0
      %324 = vmatpush2.msra.mxu0 0.0
      %325 = vmatprep.subr.mxu0 0.0
      %326 = vmatpush2.msra.mxu0 0.0
      %327 = vmatprep.subr.mxu0 0.0
      %328 = vmatpush2.msra.mxu0 0.0
      %329 = vmatprep.subr.mxu0 0.0
      %330 = vmatpush2.msra.mxu0 0.0
      %331 = vmatprep.subr.mxu0 0.0
      %332 = vmatpush2.msra.mxu0 0.0
      %333 = vmatprep.subr.mxu0 0.0
      %334 = vmatpush2.msra.mxu0 0.0
      %335 = vmatprep.subr.mxu0 0.0
      %336 = vmatpush2.msra.mxu0 0.0
      %337 = vmatprep.subr.mxu0 0.0
      %338 = vmatpush2.msra.mxu0 0.0
      %339 = vmatprep.subr.mxu0 0.0
      %340 = vmatpush2.msra.mxu0 0.0
      %341 = vmatprep.subr.mxu0 0.0
      %342 = vmatpush2.msra.mxu0 0.0
      %343 = vmatprep.subr.mxu0 0.0
      %344 = vmatpush2.msra.mxu0 0.0
      %345 = vmatprep.subr.mxu0 0.0
      %346 = vmatpush2.msra.mxu0 0.0
      %347 = vmatprep.subr.mxu0 0.0
      %348 = vmatpush2.msra.mxu0 0.0
      %349 = vmatprep.mubr.f32.mxu0 0.0
      %350 = vmatmul.mubr.f32.gmra.mxu0 %v283
      %v351 = vpop.f32.mrf.mxu0
      %v352 = vadd.f32 %v104, %v351
      %v353 = vpop.f32.mrf.mxu0
      %354 = vdwg.mxu0
      %v355 = vtanh.pop %v352
      %v356 = vsub.f32 %v198, %v281
      %v357 = vsub.f32 %v281, %v355
      %v358 = vmul.f32 %v357, %v357
      %v359 = vsel %vm108, %v358, 0.0
      %360 = vadd.xlane.f32.xlu0 %v359
      %v361 = vpop.xlane.xlu0 %360
      %v362 = vrot.slane %v361, 4
      %v363 = vadd.f32 %v361, %v362
      %v364 = vrot.slane %v363, 2
      %v365 = vadd.f32 %v363, %v364
      %v366 = vrot.slane %v365, 1
      %v367 = vadd.f32 %v365, %v366
      %s368 = vtos %v367
      %s369 = sadd.s32 %s201, 1
    $region22: #{transformers_forward.1} parent=1 // loop_footer
      _
    $region23: #{transformers_forward.1} parent=1 // loop_footer_branch
      %196 = sbr.rel target = $region19
    $region24: #{transformers_forward.1} parent=1 // loop_exit
      _
    %v370 = vmul.f32 %v199, %v199
    %v371 = vsel %vm108, %v370, 0.0
    %372 = vadd.xlane.f32.xlu0 %v371
    %v373 = vpop.xlane.xlu0 %372
    %v374 = vrot.slane %v373, 4
    %v375 = vadd.f32 %v373, %v374
    %v376 = vrot.slane %v375, 2
    %v377 = vadd.f32 %v375, %v376
    %v378 = vrot.slane %v377, 1
    %v379 = vadd.f32 %v377, %v378
    %s380 = vtos %v379
    %p381 = scmp.lt.f32.partialorder %s380, 1e-08
    %s382 = scalar_select %p381, 1, 0
    %v383 = vstv %s382
    %vm384 = vcmp.eq.s32.totalorder %v383, 1
    %v385 = vsel %vm384, %v197, %v198
    %s386 = scalar_lea.vmem %s3, 16
    %v387 = vld [vmem:[%s386] sm:$0xff]
    %v388 = vld [vmem:[%s386 + $0x8] sm:$0xff]
    %v389 = vtanh.pop %v385
    %v391 = vsel %vm108, %v389, 0
    %393 = vmatprep.subr.mxu0 0.0
    %394 = vmatpush1.msra.mxu0 0.0
    %395 = vmatprep.subr.mxu0 0.0
    %396 = vmatpush1.msra.mxu0 0.0
    %397 = vmatprep.subr.mxu0 0.0
    %398 = vmatpush1.msra.mxu0 0.0
    %399 = vmatprep.subr.mxu0 0.0
    %400 = vmatpush1.msra.mxu0 0.0
    %401 = vmatprep.subr.mxu0 0.0
    %402 = vmatpush1.msra.mxu0 0.0
    %403 = vmatprep.subr.mxu0 0.0
    %404 = vmatpush1.msra.mxu0 0.0
    %405 = vmatprep.subr.mxu0 0.0
    %406 = vmatpush1.msra.mxu0 0.0
    %407 = vmatprep.subr.mxu0 0.0
    %408 = vmatpush1.msra.mxu0 0.0
    %409 = vmatprep.subr.mxu0 0.0
    %410 = vmatpush1.msra.mxu0 0.0
    %411 = vmatprep.subr.mxu0 0.0
    %412 = vmatpush1.msra.mxu0 0.0
    %413 = vmatprep.subr.mxu0 0.0
    %414 = vmatpush1.msra.mxu0 0.0
    %415 = vmatprep.subr.mxu0 0.0
    %416 = vmatpush1.msra.mxu0 0.0
    %417 = vmatprep.subr.mxu0 0.0
    %418 = vmatpush1.msra.mxu0 0.0
    %419 = vmatprep.subr.mxu0 0.0
    %420 = vmatpush1.msra.mxu0 0.0
    %421 = vmatprep.subr.mxu0 0.0
    %422 = vmatpush1.msra.mxu0 %v388
    %423 = vmatprep.subr.mxu0 0.0
    %424 = vmatpush1.msra.mxu0 %v387
    %425 = vmatprep.subr.mxu0 0.0
    %426 = vmatpush2.msra.mxu0 0.0
    %427 = vmatprep.subr.mxu0 0.0
    %428 = vmatpush2.msra.mxu0 0.0
    %429 = vmatprep.subr.mxu0 0.0
    %430 = vmatpush2.msra.mxu0 0.0
    %431 = vmatprep.subr.mxu0 0.0
    %432 = vmatpush2.msra.mxu0 0.0
    %433 = vmatprep.subr.mxu0 0.0
    %434 = vmatpush2.msra.mxu0 0.0
    %435 = vmatprep.subr.mxu0 0.0
    %436 = vmatpush2.msra.mxu0 0.0
    %437 = vmatprep.subr.mxu0 0.0
    %438 = vmatpush2.msra.mxu0 0.0
    %439 = vmatprep.subr.mxu0 0.0
    %440 = vmatpush2.msra.mxu0 0.0
    %441 = vmatprep.subr.mxu0 0.0
    %442 = vmatpush2.msra.mxu0 0.0
    %443 = vmatprep.subr.mxu0 0.0
    %444 = vmatpush2.msra.mxu0 0.0
    %445 = vmatprep.subr.mxu0 0.0
    %446 = vmatpush2.msra.mxu0 0.0
    %447 = vmatprep.subr.mxu0 0.0
    %448 = vmatpush2.msra.mxu0 0.0
    %449 = vmatprep.subr.mxu0 0.0
    %450 = vmatpush2.msra.mxu0 0.0
    %451 = vmatprep.subr.mxu0 0.0
    %452 = vmatpush2.msra.mxu0 0.0
    %453 = vmatprep.subr.mxu0 0.0
    %454 = vmatpush2.msra.mxu0 0.0
    %455 = vmatprep.subr.mxu0 0.0
    %456 = vmatpush2.msra.mxu0 0.0
    %457 = vmatprep.mubr.f32.mxu0 0.0
    %458 = vmatmul.mubr.f32.gmra.mxu0 %v391
    %v459 = vpop.f32.mrf.mxu0
    %v460 = vadd.f32 %v385, %v459
    %v461 = vpop.f32.mrf.mxu0
    %462 = vdwg.mxu0
    %v463 = vtanh.pop %v460
    %v464 = vsub.f32 0.0, %v389
    %v465 = vsub.f32 %v389, %v463
    %v466 = vmul.f32 %v465, %v465
    %v467 = vsel %vm108, %v466, 0.0
    %468 = vadd.xlane.f32.xlu0 %v467
    %v469 = vpop.xlane.xlu0 %468
    %v470 = vrot.slane %v469, 4
    %v471 = vadd.f32 %v469, %v470
    %v472 = vrot.slane %v471, 2
    %v473 = vadd.f32 %v471, %v472
    %v474 = vrot.slane %v473, 1
    %v475 = vadd.f32 %v473, %v474
    %s476 = vtos %v475
    // While loop
    $region25: #{transformers_forward.1} parent=1 // loop_pre_header
      _
    $region26: #{transformers_forward.1} parent=1 // loop_header
      %v478 = vphi %v389, %v562
      %v479 = vphi %v463, %v636
      %v480 = vphi %v464, %v637
      %s481 = sphi %s476, %s649
      %s482 = sphi 1, %s650
      %p483 = scmp.lt.s32.totalorder %s482, 25
      %p484 = scmp.ge.f32.partialorder %s481, 1e-08
      %p485 = pnand %p483, %p484
      %p486 = pneg %p485
    $region27: #{transformers_forward.1} parent=1 // loop_header_branch
      %488 = sbr.rel (%p485) target = $region31
    $region28: #{transformers_forward.1} parent=1 // loop_body
      %v490 = vsel %vm108, %v479, 0
      %492 = vmatprep.subr.mxu0 0.0
      %493 = vmatpush1.msra.mxu0 0.0
      %494 = vmatprep.subr.mxu0 0.0
      %495 = vmatpush1.msra.mxu0 0.0
      %496 = vmatprep.subr.mxu0 0.0
      %497 = vmatpush1.msra.mxu0 0.0
      %498 = vmatprep.subr.mxu0 0.0
      %499 = vmatpush1.msra.mxu0 0.0
      %500 = vmatprep.subr.mxu0 0.0
      %501 = vmatpush1.msra.mxu0 0.0
      %502 = vmatprep.subr.mxu0 0.0
      %503 = vmatpush1.msra.mxu0 0.0
      %504 = vmatprep.subr.mxu0 0.0
      %505 = vmatpush1.msra.mxu0 0.0
      %506 = vmatprep.subr.mxu0 0.0
      %507 = vmatpush1.msra.mxu0 0.0
      %508 = vmatprep.subr.mxu0 0.0
      %509 = vmatpush1.msra.mxu0 0.0
      %510 = vmatprep.subr.mxu0 0.0
      %511 = vmatpush1.msra.mxu0 0.0
      %512 = vmatprep.subr.mxu0 0.0
      %513 = vmatpush1.msra.mxu0 0.0
      %514 = vmatprep.subr.mxu0 0.0
      %515 = vmatpush1.msra.mxu0 0.0
      %516 = vmatprep.subr.mxu0 0.0
      %517 = vmatpush1.msra.mxu0 0.0
      %518 = vmatprep.subr.mxu0 0.0
      %519 = vmatpush1.msra.mxu0 0.0
      %520 = vmatprep.subr.mxu0 0.0
      %521 = vmatpush1.msra.mxu0 %v388
      %522 = vmatprep.subr.mxu0 0.0
      %523 = vmatpush1.msra.mxu0 %v387
      %524 = vmatprep.subr.mxu0 0.0
      %525 = vmatpush2.msra.mxu0 0.0
      %526 = vmatprep.subr.mxu0 0.0
      %527 = vmatpush2.msra.mxu0 0.0
      %528 = vmatprep.subr.mxu0 0.0
      %529 = vmatpush2.msra.mxu0 0.0
      %530 = vmatprep.subr.mxu0 0.0
      %531 = vmatpush2.msra.mxu0 0.0
      %532 = vmatprep.subr.mxu0 0.0
      %533 = vmatpush2.msra.mxu0 0.0
      %534 = vmatprep.subr.mxu0 0.0
      %535 = vmatpush2.msra.mxu0 0.0
      %536 = vmatprep.subr.mxu0 0.0
      %537 = vmatpush2.msra.mxu0 0.0
      %538 = vmatprep.subr.mxu0 0.0
      %539 = vmatpush2.msra.mxu0 0.0
      %540 = vmatprep.subr.mxu0 0.0
      %541 = vmatpush2.msra.mxu0 0.0
      %542 = vmatprep.subr.mxu0 0.0
      %543 = vmatpush2.msra.mxu0 0.0
      %544 = vmatprep.subr.mxu0 0.0
      %545 = vmatpush2.msra.mxu0 0.0
      %546 = vmatprep.subr.mxu0 0.0
      %547 = vmatpush2.msra.mxu0 0.0
      %548 = vmatprep.subr.mxu0 0.0
      %549 = vmatpush2.msra.mxu0 0.0
      %550 = vmatprep.subr.mxu0 0.0
      %551 = vmatpush2.msra.mxu0 0.0
      %552 = vmatprep.subr.mxu0 0.0
      %553 = vmatpush2.msra.mxu0 0.0
      %554 = vmatprep.subr.mxu0 0.0
      %555 = vmatpush2.msra.mxu0 0.0
      %556 = vmatprep.mubr.f32.mxu0 0.0
      %557 = vmatmul.mubr.f32.gmra.mxu0 %v490
      %v558 = vpop.f32.mrf.mxu0
      %v559 = vadd.f32 %v385, %v558
      %v560 = vpop.f32.mrf.mxu0
      %561 = vdwg.mxu0
      %v562 = vtanh.pop %v559
      %v564 = vsel %vm108, %v562, 0
      %566 = vmatprep.subr.mxu0 0.0
      %567 = vmatpush1.msra.mxu0 0.0
      %568 = vmatprep.subr.mxu0 0.0
      %569 = vmatpush1.msra.mxu0 0.0
      %570 = vmatprep.subr.mxu0 0.0
      %571 = vmatpush1.msra.mxu0 0.0
      %572 = vmatprep.subr.mxu0 0.0
      %573 = vmatpush1.msra.mxu0 0.0
      %574 = vmatprep.subr.mxu0 0.0
      %575 = vmatpush1.msra.mxu0 0.0
      %576 = vmatprep.subr.mxu0 0.0
      %577 = vmatpush1.msra.mxu0 0.0
      %578 = vmatprep.subr.mxu0 0.0
      %579 = vmatpush1.msra.mxu0 0.0
      %580 = vmatprep.subr.mxu0 0.0
      %581 = vmatpush1.msra.mxu0 0.0
      %582 = vmatprep.subr.mxu0 0.0
      %583 = vmatpush1.msra.mxu0 0.0
      %584 = vmatprep.subr.mxu0 0.0
      %585 = vmatpush1.msra.mxu0 0.0
      %586 = vmatprep.subr.mxu0 0.0
      %587 = vmatpush1.msra.mxu0 0.0
      %588 = vmatprep.subr.mxu0 0.0
      %589 = vmatpush1.msra.mxu0 0.0
      %590 = vmatprep.subr.mxu0 0.0
      %591 = vmatpush1.msra.mxu0 0.0
      %592 = vmatprep.subr.mxu0 0.0
      %593 = vmatpush1.msra.mxu0 0.0
      %594 = vmatprep.subr.mxu0 0.0
      %595 = vmatpush1.msra.mxu0 %v388
      %596 = vmatprep.subr.mxu0 0.0
      %597 = vmatpush1.msra.mxu0 %v387
      %598 = vmatprep.subr.mxu0 0.0
      %599 = vmatpush2.msra.mxu0 0.0
      %600 = vmatprep.subr.mxu0 0.0
      %601 = vmatpush2.msra.mxu0 0.0
      %602 = vmatprep.subr.mxu0 0.0
      %603 = vmatpush2.msra.mxu0 0.0
      %604 = vmatprep.subr.mxu0 0.0
      %605 = vmatpush2.msra.mxu0 0.0
      %606 = vmatprep.subr.mxu0 0.0
      %607 = vmatpush2.msra.mxu0 0.0
      %608 = vmatprep.subr.mxu0 0.0
      %609 = vmatpush2.msra.mxu0 0.0
      %610 = vmatprep.subr.mxu0 0.0
      %611 = vmatpush2.msra.mxu0 0.0
      %612 = vmatprep.subr.mxu0 0.0
      %613 = vmatpush2.msra.mxu0 0.0
      %614 = vmatprep.subr.mxu0 0.0
      %615 = vmatpush2.msra.mxu0 0.0
      %616 = vmatprep.subr.mxu0 0.0
      %617 = vmatpush2.msra.mxu0 0.0
      %618 = vmatprep.subr.mxu0 0.0
      %619 = vmatpush2.msra.mxu0 0.0
      %620 = vmatprep.subr.mxu0 0.0
      %621 = vmatpush2.msra.mxu0 0.0
      %622 = vmatprep.subr.mxu0 0.0
      %623 = vmatpush2.msra.mxu0 0.0
      %624 = vmatprep.subr.mxu0 0.0
      %625 = vmatpush2.msra.mxu0 0.0
      %626 = vmatprep.subr.mxu0 0.0
      %627 = vmatpush2.msra.mxu0 0.0
      %628 = vmatprep.subr.mxu0 0.0
      %629 = vmatpush2.msra.mxu0 0.0
      %630 = vmatprep.mubr.f32.mxu0 0.0
      %631 = vmatmul.mubr.f32.gmra.mxu0 %v564
      %v632 = vpop.f32.mrf.mxu0
      %v633 = vadd.f32 %v385, %v632
      %v634 = vpop.f32.mrf.mxu0
      %635 = vdwg.mxu0
      %v636 = vtanh.pop %v633
      %v637 = vsub.f32 %v479, %v562
      %v638 = vsub.f32 %v562, %v636
      %v639 = vmul.f32 %v638, %v638
      %v640 = vsel %vm108, %v639, 0.0
      %641 = vadd.xlane.f32.xlu0 %v640
      %v642 = vpop.xlane.xlu0 %641
      %v643 = vrot.slane %v642, 4
      %v644 = vadd.f32 %v642, %v643
      %v645 = vrot.slane %v644, 2
      %v646 = vadd.f32 %v644, %v645
      %v647 = vrot.slane %v646, 1
      %v648 = vadd.f32 %v646, %v647
      %s649 = vtos %v648
      %s650 = sadd.s32 %s482, 1
    $region29: #{transformers_forward.1} parent=1 // loop_footer
      _
    $region30: #{transformers_forward.1} parent=1 // loop_footer_branch
      %477 = sbr.rel target = $region26
    $region31: #{transformers_forward.1} parent=1 // loop_exit
      _
    %v651 = vmul.f32 %v480, %v480
    %v652 = vsel %vm108, %v651, 0.0
    %653 = vadd.xlane.f32.xlu0 %v652
    %v654 = vpop.xlane.xlu0 %653
    %v655 = vrot.slane %v654, 4
    %v656 = vadd.f32 %v654, %v655
    %v657 = vrot.slane %v656, 2
    %v658 = vadd.f32 %v656, %v657
    %v659 = vrot.slane %v658, 1
    %v660 = vadd.f32 %v658, %v659
    %s661 = vtos %v660
    %p662 = scmp.lt.f32.partialorder %s661, 1e-08
    %s663 = scalar_select %p662, 1, 0
    %v664 = vstv %s663
    %vm665 = vcmp.eq.s32.totalorder %v664, 1
    %v666 = vsel %vm665, %v478, %v479
    %667 = vst.msk [vmem:[#allocation2] sm:$0xff] %vm108, %v666
    // Predicated region
    $region32: #{transformers_forward.1} parent=1 // pred_check
      _
    $region33: #{transformers_forward.1} parent=1 // pred_check_branch
      %669 = sbr.rel (0) target = $region35
    $region34: #{transformers_forward.1} parent=1 // pred_region
      %s671 = ssub.s32 128, 128
      %672 = vsyncadd [#allocation3], %s671
      %s674 = sshll.u32 [#allocation2], 4
      %s675 = int_to_ptr.vmem [resolvable:$true] %s674
      %677 = dma.vmem_to_hbm [thread:$0]  %s675, 128, %s4, [#allocation3]
    $region35: #{transformers_forward.1} parent=1 // pred_fallthru
      _
    // Predicated region
    $region36: #{transformers_forward.1} parent=1 // pred_check
      _
    $region37: #{transformers_forward.1} parent=1 // pred_check_branch
      %679 = sbr.rel (0) target = $region39
    $region38: #{transformers_forward.1} parent=1 // pred_region
      %680 = dma.done [#allocation3], 128
    $region39: #{transformers_forward.1} parent=1 // pred_fallthru
      _
    %681 = vsyncpa [#allocation3], 1

</llo_original>
